<compile_context>
chip_gen: v7x
topology: tpu7x:2x2x1
jax: 0.10.0
libtpu: 0.0.40
codegen_flags: <defaults>
</compile_context>

<pallas_src>
import functools

import numpy as np
import jax
import jax.numpy as jnp
from jax.experimental import pallas as pl
from jax.experimental.pallas import tpu as pltpu

BN_EPS = 1e-5


# --------------------------------------------------------------------------- #
# Pass 1: BatchNorm batch statistics -> fused (scale, shift) affine.
# One-pass moments (sum, sum of squares) accumulated over the batch grid.
# --------------------------------------------------------------------------- #
def _bn_stats_kernel(x_ref, gb_ref, o_ref, *, batch, eps):
    i = pl.program_id(0)

    @pl.when(i == 0)
    def _init():
        o_ref[...] = jnp.zeros_like(o_ref)

    x = x_ref[...]                                           # (TB, C*L)
    o_ref[0:1, :] += jnp.sum(x, axis=0, keepdims=True)       # sum(x)
    o_ref[1:2, :] += jnp.sum(x * x, axis=0, keepdims=True)   # sum(x^2)

    @pl.when(i == pl.num_programs(0) - 1)
    def _finalize():
        inv_b = 1.0 / batch
        mean = o_ref[0:1, :] * inv_b
        var = o_ref[1:2, :] * inv_b - mean * mean            # biased variance
        scale = gb_ref[0:1, :] * jax.lax.rsqrt(var + eps)    # gamma * rsqrt
        o_ref[0:1, :] = scale
        o_ref[1:2, :] = gb_ref[1:2, :] - mean * scale        # beta - mean*scale


# --------------------------------------------------------------------------- #
# Pass 2: fused BN-affine + Conv1d (block-Toeplitz matmul) + ReLU + MaxPool1d
#         + Linear + ReLU + Linear + Sigmoid.
# --------------------------------------------------------------------------- #
def _fused_kernel(x_ref, aff_ref, wt_ref, w1_ref, w2_ref, bias_ref, o_ref,
                  *, n_conv, pool, pooled_width, hidden, classes):
    # x: (TB, C*L) lane-dense; aff: (2, C*L) = [scale; shift]
    # wt: (C*L, pool*pool_len*F) block-Toeplitz conv weight (columns ordered p,u,f)
    # w1: (pool_len*F, H), w2: (H, classes)
    # bias: (3, width) = [conv_b expanded; fc1_b; fc2_b] (lane-padded)
    x = x_ref[...]
    x = x * aff_ref[0:1, :] + aff_ref[1:2, :]                # BatchNorm affine

    conv = jnp.dot(x, wt_ref[...], preferred_element_type=jnp.float32)
    conv = jnp.maximum(conv + bias_ref[0:1, :n_conv], 0.0)   # (TB, pool*pool_len*F)

    # MaxPool1d: max over `pool` contiguous lane slices (no reshape/relayout).
    pooled = conv[:, :pooled_width]
    for p in range(1, pool):
        pooled = jnp.maximum(pooled, conv[:, p * pooled_width:(p + 1) * pooled_width])

    h = jnp.dot(pooled, w1_ref[...], preferred_element_type=jnp.float32)
    h = jnp.maximum(h + bias_ref[1:2, :hidden], 0.0)
    logits = jnp.dot(h, w2_ref[...], preferred_element_type=jnp.float32)
    logits = logits + bias_ref[2:3, :classes]
    o_ref[...] = jax.nn.sigmoid(logits).astype(o_ref.dtype)


# --------------------------------------------------------------------------- #
# One-time parameter re-layout (host side, outside the hot path).
# --------------------------------------------------------------------------- #
def prepare_params(params, *, channels, length, kernel_size, stride, padding, pooling):
    C, L = channels, length
    conv_w = np.asarray(params["conv_w"], np.float32)        # (F, C, K)
    F, _, K = conv_w.shape
    conv_len = (L - K + 2 * padding) // stride + 1
    pool_len = conv_len // pooling
    n_conv = pooling * pool_len * F

    # Block-Toeplitz conv weight: conv (with zero padding and pool-window
    # truncation) as x_flat @ W_toep.  Column index n = (p*pool_len + u)*F + f
    # with t = u*pooling + p, so pooling is a max over `pooling` contiguous
    # lane groups of width pool_len*F.
    w_toep = np.zeros((C * L, n_conv), np.float32)
    for p in range(pooling):
        for u in range(pool_len):
            t = u * pooling + p
            col = (p * pool_len + u) * F
            for k in range(K):
                l = t * stride + k - padding
                if 0 <= l < L:
                    # rows c*L + l for all c, columns f
                    w_toep[l::L, col:col + F] = conv_w[:, :, k].T

    H = int(params["fc1_w"].shape[0])
    classes = int(params["fc2_w"].shape[0])
    # fc1 columns reordered from PyTorch flatten order (f*pool_len + u) to (u*F + f)
    fc1_w = (np.asarray(params["fc1_w"], np.float32)
             .reshape(H, F, pool_len).transpose(2, 1, 0).reshape(pool_len * F, H))
    fc2_w = np.asarray(params["fc2_w"], np.float32).T        # (H, classes)

    width = max(n_conv, H, classes)
    bias_pack = np.zeros((3, width), np.float32)
    bias_pack[0, :n_conv] = np.tile(np.asarray(params["conv_b"], np.float32),
                                    pooling * pool_len)
    bias_pack[1, :H] = np.asarray(params["fc1_b"], np.float32)
    bias_pack[2, :classes] = np.asarray(params["fc2_b"], np.float32)

    # gamma/beta packed for the stats pass (PyTorch flatten order c*L + l,
    # which is exactly x.reshape(B, C*L) -- no permutation needed).
    gb_pack = np.stack([np.asarray(params["bn_gamma"], np.float32),
                        np.asarray(params["bn_beta"], np.float32)], axis=0)

    return {
        "w_toep": jnp.asarray(w_toep),
        "fc1_w": jnp.asarray(fc1_w),
        "fc2_w": jnp.asarray(fc2_w),
        "bias_pack": jnp.asarray(bias_pack),
        "gb_pack": jnp.asarray(gb_pack),
    }


def _pick_batch_tile(b, target):
    """Largest batch tile <= target that keeps blocks sublane-aligned."""
    if b <= 8 or b % 8 != 0:
        return b                       # small/odd batch: one whole-batch block
    tb = min(target, b)
    tb -= tb % 8
    tb = max(tb, 8)
    while b % tb:
        tb -= 8
    return tb


# --------------------------------------------------------------------------- #
# Forward wrapper: reshape-only glue + two pallas_calls (stats, fused forward).
# --------------------------------------------------------------------------- #
def structure_forward(x, prepped, *, pooling, batch_tile=128):
    B, C, L = x.shape
    LC = C * L
    n_conv = prepped["w_toep"].shape[1]
    pooled_width = n_conv // pooling
    H = prepped["fc1_w"].shape[1]
    classes = prepped["fc2_w"].shape[1]

    x_flat = x.reshape(B, LC)          # pure view: PyTorch flatten(1) order
    tb = _pick_batch_tile(B, batch_tile)
    grid = (B // tb,)
    vmem_limit = 32 * 1024 * 1024

    # --- Pass 1: BN batch stats (module skips BN entirely when B == 1) -------
    if B > 1:
        bn_aff = pl.pallas_call(
            functools.partial(_bn_stats_kernel, batch=B, eps=BN_EPS),
            out_shape=jax.ShapeDtypeStruct((2, LC), jnp.float32),
            grid_spec=pltpu.PrefetchScalarGridSpec(
                num_scalar_prefetch=0,
                grid=grid,
                in_specs=[pl.BlockSpec((tb, LC), lambda i: (i, 0)),
                          pl.BlockSpec((2, LC), lambda i: (0, 0))],
                out_specs=pl.BlockSpec((2, LC), lambda i: (0, 0))),
            compiler_params=pltpu.CompilerParams(
                dimension_semantics=("arbitrary",),
                vmem_limit_bytes=vmem_limit),
        )(x_flat, prepped["gb_pack"])
    else:
        # Identity affine: matches the PyTorch forward, which skips BatchNorm at B==1.
        bn_aff = jnp.concatenate(
            [jnp.ones((1, LC), jnp.float32), jnp.zeros((1, LC), jnp.float32)], axis=0)

    # --- Pass 2: fused forward, batch grid sharded across cores --------------
    kern = functools.partial(_fused_kernel, n_conv=n_conv, pool=pooling,
                             pooled_width=pooled_width, hidden=H, classes=classes)
    out = pl.pallas_call(
        kern,
        out_shape=jax.ShapeDtypeStruct((B, classes), jnp.float32),
        grid_spec=pltpu.PrefetchScalarGridSpec(
            num_scalar_prefetch=0,
            grid=grid,
            in_specs=[
                pl.BlockSpec((tb, LC), lambda i: (i, 0)),                      # x tile
                pl.BlockSpec((2, LC), lambda i: (0, 0)),                       # BN affine
                pl.BlockSpec(tuple(prepped["w_toep"].shape), lambda i: (0, 0)),
                pl.BlockSpec(tuple(prepped["fc1_w"].shape), lambda i: (0, 0)),
                pl.BlockSpec(tuple(prepped["fc2_w"].shape), lambda i: (0, 0)),
                pl.BlockSpec(tuple(prepped["bias_pack"].shape), lambda i: (0, 0)),
            ],
            out_specs=pl.BlockSpec((tb, classes), lambda i: (i, 0))),
        compiler_params=pltpu.CompilerParams(
            dimension_semantics=("parallel",),
            vmem_limit_bytes=vmem_limit),
    )(x_flat, bn_aff, prepped["w_toep"], prepped["fc1_w"],
      prepped["fc2_w"], prepped["bias_pack"])
    return out


# --------------------------------------------------------------------------- #
# Pure-JAX reference (uses the original, untransformed parameters).
# --------------------------------------------------------------------------- #
def reference_forward(x, params, *, kernel_size, stride, padding, pooling):
    B, C, L = x.shape
    conv_len = (L - kernel_size + 2 * padding) // stride + 1
    pool_len = conv_len // pooling
    if B > 1:
        xf = x.reshape(B, C * L)
        mean = xf.mean(axis=0, keepdims=True)
        var = ((xf - mean) ** 2).mean(axis=0, keepdims=True)
        xf = (xf - mean) * jax.lax.rsqrt(var + BN_EPS)
        xf = xf * params["bn_gamma"][None, :] + params["bn_beta"][None, :]
        x = xf.reshape(B, C, L)
    conv = jax.lax.conv_general_dilated(
        x, params["conv_w"], window_strides=(stride,),
        padding=[(padding, padding)],
        dimension_numbers=("NCH", "OIH", "NCH"),
        precision=jax.lax.Precision.HIGHEST,
    ) + params["conv_b"][None, :, None]
    conv = jnp.maximum(conv, 0.0)
    pooled = jnp.max(conv[:, :, : pool_len * pooling]
                     .reshape(B, -1, pool_len, pooling), axis=-1)
    flat = pooled.reshape(B, -1)
    h = jnp.maximum(flat @ params["fc1_w"].T + params["fc1_b"], 0.0)
    return jax.nn.sigmoid(h @ params["fc2_w"].T + params["fc2_b"])


if __name__ == "__main__":
    # Hyperparameters consistent with the module's constructor.
    B, C, L = 16, 4, 16            # input_size = (C, L)
    classes = 6
    convnet_filters = 8
    convnet_kernel_size = 3
    convnet_stride = 1
    convnet_padding = 1
    convnet_maxpooling = 2
    convnet_fc_num = 32

    conv_len = (L - convnet_kernel_size + 2 * convnet_padding) // convnet_stride + 1
    pool_len = conv_len // convnet_maxpooling

    key = jax.random.PRNGKey(0)
    ks = jax.random.split(key, 8)
    x = jax.random.normal(ks[0], (B, C, L), jnp.float32)

    params = {
        # BatchNorm1d defaults: gamma=1, beta=0 (PyTorch default init).
        "bn_gamma": jnp.ones((C * L,), jnp.float32),
        "bn_beta": jnp.zeros((C * L,), jnp.float32),
        "conv_w": 0.2 * jax.random.normal(
            ks[1], (convnet_filters, C, convnet_kernel_size), jnp.float32),
        "conv_b": 0.1 * jax.random.normal(ks[2], (convnet_filters,), jnp.float32),
        "fc1_w": 0.2 * jax.random.normal(
            ks[3], (convnet_fc_num, convnet_filters * pool_len), jnp.float32),
        "fc1_b": 0.1 * jax.random.normal(ks[4], (convnet_fc_num,), jnp.float32),
        "fc2_w": 0.2 * jax.random.normal(ks[5], (classes, convnet_fc_num), jnp.float32),
        "fc2_b": 0.1 * jax.random.normal(ks[6], (classes,), jnp.float32),
    }

    hyper = dict(kernel_size=convnet_kernel_size, stride=convnet_stride,
                 padding=convnet_padding, pooling=convnet_maxpooling)

    prepped = prepare_params(params, channels=C, length=L, **hyper)  # one-time re-layout

    # Batched path (BN active), batch grid of 2 tiles to exercise the pipeline.
    y = structure_forward(x, prepped, pooling=convnet_maxpooling, batch_tile=8)
    y = jax.block_until_ready(y)
    assert y.shape == (B, classes), y.shape
    y_ref = jax.block_until_ready(reference_forward(x, params, **hyper))
    assert jnp.allclose(y, y_ref, atol=1e-5, rtol=1e-5), (y, y_ref)

    # B == 1 path: the PyTorch module skips BatchNorm entirely for batch size 1.
    x1 = x[:1]
    y1 = jax.block_until_ready(
        structure_forward(x1, prepped, pooling=convnet_maxpooling))
    y1_ref = jax.block_until_ready(reference_forward(x1, params, **hyper))
    assert y1.shape == (1, classes)
    assert jnp.allclose(y1, y1_ref, atol=1e-5, rtol=1e-5), (y1, y1_ref)

    # TODO(synk): BatchNorm running-stat (momentum buffer) updates are not
    # modeled; this implements the training-mode forward math only.
    print("KERNEL_OK")
</pallas_src>

<mosaic_0001>
module attributes {stable_mosaic.version = 11 : i64} {
  func.func @_bn_stats_kernel(%arg0: i32, %arg1: memref<8x64xf32, #tpu.memory_space<vmem>>, %arg2: memref<2x64xf32, #tpu.memory_space<vmem>>, %arg3: memref<2x64xf32, #tpu.memory_space<vmem>>) attributes {dimension_semantics = [#tpu.dimension_semantics<arbitrary>], iteration_bounds = array<i64: 2>, scalar_prefetch = 0 : i64, scratch_operands = 0 : i64, tpu.core_type = #tpu.core_type<tc>, window_params = [{transform_indices = @transform_0, window_bounds = array<i64: 8, 64>}, {pipeline_mode = #tpu.pipeline_mode<synchronous>, transform_indices = @transform_1, window_bounds = array<i64: 2, 64>}, {pipeline_mode = #tpu.pipeline_mode<synchronous>, transform_indices = @transform_2, window_bounds = array<i64: 2, 64>}]} {
    %c0_i32 = arith.constant 0 : i32
    %0 = arith.cmpi eq, %arg0, %c0_i32 : i32
    %1 = arith.extui %0 : i1 to i32
    %c0_i32_0 = arith.constant 0 : i32
    %2 = arith.cmpi ne, %1, %c0_i32_0 : i32
    scf.if %2 {
      %cst_11 = arith.constant 0.000000e+00 : f32
      %18 = vector.broadcast %cst_11 : f32 to vector<2x64xf32>
      %c0_12 = arith.constant 0 : index
      %c0_13 = arith.constant 0 : index
      %19 = vector.load %arg3[%c0_12, %c0_13] : memref<2x64xf32, #tpu.memory_space<vmem>>, vector<2x64xf32>
      tpu.vector_store %arg3[%c0_12, %c0_13], %18 {strides = array<i32>} : memref<2x64xf32, #tpu.memory_space<vmem>>, vector<2x64xf32>,
    } else {
    }
    %c0 = arith.constant 0 : index
    %c0_1 = arith.constant 0 : index
    %3 = vector.load %arg1[%c0, %c0_1] : memref<8x64xf32, #tpu.memory_space<vmem>>, vector<8x64xf32>
    %c0_2 = arith.constant 0 : index
    %c0_3 = arith.constant 0 : index
    %4 = vector.load %arg3[%c0_2, %c0_3] : memref<2x64xf32, #tpu.memory_space<vmem>>, vector<1x64xf32>
    %cst = arith.constant dense<0.000000e+00> : vector<64xf32>
    %5 = vector.multi_reduction <add>, %3, %cst [0] : vector<8x64xf32> to vector<64xf32>
    %6 = vector.shape_cast %5 : vector<64xf32> to vector<1x64xf32>
    %7 = arith.addf %4, %6 : vector<1x64xf32>
    %c0_4 = arith.constant 0 : index
    %c0_5 = arith.constant 0 : index
    %8 = vector.load %arg3[%c0_4, %c0_5] : memref<2x64xf32, #tpu.memory_space<vmem>>, vector<1x64xf32>
    tpu.vector_store %arg3[%c0_4, %c0_5], %7 {strides = array<i32>} : memref<2x64xf32, #tpu.memory_space<vmem>>, vector<1x64xf32>,
    %c1 = arith.constant 1 : index
    %c0_6 = arith.constant 0 : index
    %9 = vector.load %arg3[%c1, %c0_6] : memref<2x64xf32, #tpu.memory_space<vmem>>, vector<1x64xf32>
    %10 = arith.mulf %3, %3 : vector<8x64xf32>
    %cst_7 = arith.constant dense<0.000000e+00> : vector<64xf32>
    %11 = vector.multi_reduction <add>, %10, %cst_7 [0] : vector<8x64xf32> to vector<64xf32>
    %12 = vector.shape_cast %11 : vector<64xf32> to vector<1x64xf32>
    %13 = arith.addf %9, %12 : vector<1x64xf32>
    %c1_8 = arith.constant 1 : index
    %c0_9 = arith.constant 0 : index
    %14 = vector.load %arg3[%c1_8, %c0_9] : memref<2x64xf32, #tpu.memory_space<vmem>>, vector<1x64xf32>
    tpu.vector_store %arg3[%c1_8, %c0_9], %13 {strides = array<i32>} : memref<2x64xf32, #tpu.memory_space<vmem>>, vector<1x64xf32>,
    %c1_i32 = arith.constant 1 : i32
    %15 = arith.cmpi eq, %arg0, %c1_i32 : i32
    %16 = arith.extui %15 : i1 to i32
    %c0_i32_10 = arith.constant 0 : i32
    %17 = arith.cmpi ne, %16, %c0_i32_10 : i32
    scf.if %17 {
      %c0_11 = arith.constant 0 : index
      %c0_12 = arith.constant 0 : index
      %18 = vector.load %arg3[%c0_11, %c0_12] : memref<2x64xf32, #tpu.memory_space<vmem>>, vector<1x64xf32>
      %cst_13 = arith.constant 6.250000e-02 : f32
      %19 = vector.broadcast %cst_13 : f32 to vector<1x64xf32>
      %20 = arith.mulf %18, %19 : vector<1x64xf32>
      %c1_14 = arith.constant 1 : index
      %c0_15 = arith.constant 0 : index
      %21 = vector.load %arg3[%c1_14, %c0_15] : memref<2x64xf32, #tpu.memory_space<vmem>>, vector<1x64xf32>
      %cst_16 = arith.constant 6.250000e-02 : f32
      %22 = vector.broadcast %cst_16 : f32 to vector<1x64xf32>
      %23 = arith.mulf %21, %22 : vector<1x64xf32>
      %24 = arith.mulf %20, %20 : vector<1x64xf32>
      %25 = arith.subf %23, %24 : vector<1x64xf32>
      %c0_17 = arith.constant 0 : index
      %c0_18 = arith.constant 0 : index
      %26 = vector.load %arg2[%c0_17, %c0_18] : memref<2x64xf32, #tpu.memory_space<vmem>>, vector<1x64xf32>
      %cst_19 = arith.constant 9.99999974E-6 : f32
      %27 = vector.broadcast %cst_19 : f32 to vector<1x64xf32>
      %28 = arith.addf %25, %27 : vector<1x64xf32>
      %29 = math.rsqrt %28 : vector<1x64xf32>
      %30 = arith.mulf %26, %29 : vector<1x64xf32>
      %c0_20 = arith.constant 0 : index
      %c0_21 = arith.constant 0 : index
      %31 = vector.load %arg3[%c0_20, %c0_21] : memref<2x64xf32, #tpu.memory_space<vmem>>, vector<1x64xf32>
      tpu.vector_store %arg3[%c0_20, %c0_21], %30 {strides = array<i32>} : memref<2x64xf32, #tpu.memory_space<vmem>>, vector<1x64xf32>,
      %c1_22 = arith.constant 1 : index
      %c0_23 = arith.constant 0 : index
      %32 = vector.load %arg2[%c1_22, %c0_23] : memref<2x64xf32, #tpu.memory_space<vmem>>, vector<1x64xf32>
      %33 = arith.mulf %20, %30 : vector<1x64xf32>
      %34 = arith.subf %32, %33 : vector<1x64xf32>
      %c1_24 = arith.constant 1 : index
      %c0_25 = arith.constant 0 : index
      %35 = vector.load %arg3[%c1_24, %c0_25] : memref<2x64xf32, #tpu.memory_space<vmem>>, vector<1x64xf32>
      tpu.vector_store %arg3[%c1_24, %c0_25], %34 {strides = array<i32>} : memref<2x64xf32, #tpu.memory_space<vmem>>, vector<1x64xf32>,
    } else {
    }
    return
  }
  func.func @transform_0(%arg0: i32) -> (i32, i32) {
    %c0_i32 = arith.constant 0 : i32
    %c0_i32_0 = arith.constant 0 : i32
    return %arg0, %c0_i32 : i32, i32
  }
  func.func @transform_1(%arg0: i32) -> (i32, i32) {
    %c0_i32 = arith.constant 0 : i32
    %c0_i32_0 = arith.constant 0 : i32
    %c0_i32_1 = arith.constant 0 : i32
    return %c0_i32, %c0_i32_0 : i32, i32
  }
  func.func @transform_2(%arg0: i32) -> (i32, i32) {
    %c0_i32 = arith.constant 0 : i32
    %c0_i32_0 = arith.constant 0 : i32
    %c0_i32_1 = arith.constant 0 : i32
    return %c0_i32, %c0_i32_0 : i32, i32
  }
}

</mosaic_0001>

<llo_original>
// kernel: tpu_custom_call.1
$region0: #{tpu_custom_call.1}
  #allocation0 [shape = 'u32[]', space=smem, size = 0x4, offset = 0x4, fixed_abs, tag = 'smem constant byte address 0x4 - core index']
  #allocation1 [shape = 'u32[144,128]{1,0:T(1,128)}', space=vmem, size = 0x12000, scoped, tag = 'internal scratch']
  %s0 = inlined_call_operand.hbm [shape: f32[16,64], index: 0, kind: input, shape index: {}]
  %s1 = inlined_call_operand.vmem [shape: f32[2,64], index: 1, kind: input, shape index: {}]
  %s2 = inlined_call_operand.hbm [shape: f32[2,64], index: 2, kind: output, shape index: {}]
  %s3 = sld [smem:[#allocation0]]
  $region53: #{tpu_custom_call.1} parent=0
    _
  %s5 = ssub.s32 1, %s3
  %s6 = scalar_select 0, %s5, %s3
  $region1: #{tpu_custom_call.1} parent=0
    #allocation2 [shape = 'u8[8192]{0}', space=vmem, size = 0x2000, scoped, tag = 'input window, operand 0']
    #allocation3 [shape = 's32[2]{0}', space=sflag, size = 0x8, scoped, tag = 'scoped memory for tpu_custom_call.1']
    #allocation4 [shape = 's32[2]{0}', space=sflag, size = 0x8, scoped, tag = 'scoped memory for tpu_custom_call.1']
    #allocation5 [shape = 'u8[1024]{0}', space=vmem, size = 0x400, scoped, tag = 'output window, operand 0, single buffered']
    %7 = vsyncpa [#allocation3], 0
    %s8 = scalar_lea.sflag [#allocation3], 1
    %9 = vsyncpa %s8, 0
    %10 = vsyncpa [#allocation4], 0
    loop: start=0, step=1, limit=4
    $region2: #{tpu_custom_call.1} parent=1 // loop_pre_header
      _
    $region3: #{tpu_custom_call.1} parent=1 // loop_header
      %s12 = sphi 0, %s16
      %p13 = scmp.ge.s32.totalorder %s12, 4
      %s22 = sphi 0, %s24
      %s25 = sphi 0, %s22
      %s26 = sphi 0, %s25
      %s42 = sphi 0, %s26
      %s46 = sphi 0, %s46
      %s48 = sphi 0, %s46
      %s49 = sphi 0, %s48
      %s63 = sphi 0, %s49
      %s67 = sphi 0, %s67
      %s69 = sphi 0, %s67
      %s70 = sphi 0, %s69
      %s84 = sphi 0, %s70
    $region4: #{tpu_custom_call.1} parent=1 // loop_header_branch
      %15 = sbr.rel (%p13) target = $region8
    $region5: #{tpu_custom_call.1} parent=1 // loop_body
      %s17 = ssub.s32 %s12, 1
      %s18 = ssub.s32 %s12, 2
      %s19 = sadd.s32 %s12, 1
      %s20 = ssub.s32 %s12, %s19
      %p21 = scmp.eq.s32.totalorder %s20, 0
      %s23 = sadd.s32 %s22, 1
      %s24 = scalar_select %p21, %s22, %s23
      %p27 = pneg %p21
      %p28 = scmp.eq.s32.totalorder %s12, 1
      %p29 = por %p27, %p28
      %p30 = scmp.ne.s32.totalorder %s22, %s25
      %p31 = scmp.eq.s32.totalorder %s12, 0
      %p32 = por %p30, %p31
      %p33 = scmp.ne.s32.totalorder %s22, %s25
      %p34 = scmp.eq.s32.totalorder %s17, 1
      %p35 = por %p33, %p34
      %p36 = scmp.ne.s32.totalorder %s25, %s26
      %p37 = scmp.eq.s32.totalorder %s17, 0
      %p38 = por %p36, %p37
      %p39 = scmp.ne.s32.totalorder %s25, %s26
      %p40 = scmp.eq.s32.totalorder %s18, 1
      %p41 = por %p39, %p40
      %p43 = scmp.ne.s32.totalorder %s26, %s42
      %p44 = scmp.eq.s32.totalorder %s18, 0
      %p45 = por %p43, %p44
      %s47 = sadd.s32 %s46, 1
      %p50 = scmp.eq.s32.totalorder %s12, 1
      %p51 = scmp.ne.s32.totalorder %s46, %s48
      %p52 = scmp.eq.s32.totalorder %s12, 0
      %p53 = por %p51, %p52
      %p54 = scmp.ne.s32.totalorder %s46, %s48
      %p55 = scmp.eq.s32.totalorder %s17, 1
      %p56 = por %p54, %p55
      %p57 = scmp.ne.s32.totalorder %s48, %s49
      %p58 = scmp.eq.s32.totalorder %s17, 0
      %p59 = por %p57, %p58
      %p60 = scmp.ne.s32.totalorder %s48, %s49
      %p61 = scmp.eq.s32.totalorder %s18, 1
      %p62 = por %p60, %p61
      %p64 = scmp.ne.s32.totalorder %s49, %s63
      %p65 = scmp.eq.s32.totalorder %s18, 0
      %p66 = por %p64, %p65
      %s68 = sadd.s32 %s67, 1
      %p71 = scmp.eq.s32.totalorder %s12, 1
      %p72 = scmp.ne.s32.totalorder %s67, %s69
      %p73 = scmp.eq.s32.totalorder %s12, 0
      %p74 = por %p72, %p73
      %p75 = scmp.ne.s32.totalorder %s67, %s69
      %p76 = scmp.eq.s32.totalorder %s17, 1
      %p77 = por %p75, %p76
      %p78 = scmp.ne.s32.totalorder %s69, %s70
      %p79 = scmp.eq.s32.totalorder %s17, 0
      %p80 = por %p78, %p79
      %p81 = scmp.ne.s32.totalorder %s69, %s70
      %p82 = scmp.eq.s32.totalorder %s18, 1
      %p83 = por %p81, %p82
      %p85 = scmp.ne.s32.totalorder %s70, %s84
      %p86 = scmp.eq.s32.totalorder %s18, 0
      %p87 = por %p85, %p86
      %p88 = scmp.le.s32.totalorder 1, %s12
      %p89 = scmp.lt.s32.totalorder %s12, 3
      %p90 = pnand %p88, %p89
      %p91 = pneg %p90
      // Predicated region
      $region9: #{tpu_custom_call.1} parent=5 // pred_check
        _
      $region10: #{tpu_custom_call.1} parent=5 // pred_check_branch
        %93 = sbr.rel (%p90) target = $region12
      $region11: #{tpu_custom_call.1} parent=5 // pred_region
        %s94 = ssub.s32 %s12, 1
        // Predicated region
        $region13: #{tpu_custom_call.1} parent=11 // pred_check
          %p95 = pneg %p59
        $region14: #{tpu_custom_call.1} parent=11 // pred_check_branch
          %97 = sbr.rel (%p95) target = $region16
        $region15: #{tpu_custom_call.1} parent=11 // pred_region
          _
        $region16: #{tpu_custom_call.1} parent=11 // pred_fallthru
          _
      $region12: #{tpu_custom_call.1} parent=5 // pred_fallthru
        _
      %p98 = scmp.lt.s32.totalorder %s12, 2
      // Predicated region
      $region17: #{tpu_custom_call.1} parent=5 // pred_check
        %p99 = pneg %p98
      $region18: #{tpu_custom_call.1} parent=5 // pred_check_branch
        %101 = sbr.rel (%p99) target = $region20
      $region19: #{tpu_custom_call.1} parent=5 // pred_region
        // Predicated region
        $region21: #{tpu_custom_call.1} parent=19 // pred_check
          %p102 = pneg %p32
        $region22: #{tpu_custom_call.1} parent=19 // pred_check_branch
          %104 = sbr.rel (%p102) target = $region24
        $region23: #{tpu_custom_call.1} parent=19 // pred_region
          %s105 = sand.u32 %s22, 1
          %s106 = scalar_lea.sflag [#allocation3], %s105
          %s107 = sand.u32 %s22, 1
          %s108 = smul.addr %s107, 8
          %s109 = scalar_lea.vmem [#allocation2], %s108
          %s111 = ssub.s32 128, 128
          %112 = vsyncadd %s106, %s111
          %s113 = smul.addr %s12, 128
          %s114 = scalar_lea.hbm %s0, %s113
          %s116 = sshll.u32 %s109, 4
          %s117 = int_to_ptr.vmem [resolvable:$true] %s116
          %119 = dma.hbm_to_vmem [thread:$0]  %s114, 128, %s117, %s106
        $region24: #{tpu_custom_call.1} parent=19 // pred_fallthru
          _
      $region20: #{tpu_custom_call.1} parent=5 // pred_fallthru
        _
      %p120 = scmp.le.s32.totalorder 1, %s12
      %p121 = scmp.lt.s32.totalorder %s12, 3
      %p122 = pnand %p120, %p121
      %p123 = pneg %p122
      // Predicated region
      $region25: #{tpu_custom_call.1} parent=5 // pred_check
        _
      $region26: #{tpu_custom_call.1} parent=5 // pred_check_branch
        %125 = sbr.rel (%p122) target = $region28
      $region27: #{tpu_custom_call.1} parent=5 // pred_region
        %s126 = ssub.s32 %s12, 1
        %s127 = sand.u32 %s25, 1
        %s128 = scalar_lea.sflag [#allocation3], %s127
        %s129 = sand.u32 %s25, 1
        %s130 = smul.addr %s129, 8
        %s131 = scalar_lea.vmem [#allocation2], %s130
        // Predicated region
        $region29: #{tpu_custom_call.1} parent=27 // pred_check
          %p132 = pneg %p38
        $region30: #{tpu_custom_call.1} parent=27 // pred_check_branch
          %134 = sbr.rel (%p132) target = $region32
        $region31: #{tpu_custom_call.1} parent=27 // pred_region
          %135 = dma.done %s128, 128
        $region32: #{tpu_custom_call.1} parent=27 // pred_fallthru
          _
        %s136 = sand.u32 %s25, 1
        %s137 = scalar_lea.sflag [#allocation3], %s136
        %s138 = sand.u32 %s25, 1
        %s139 = smul.addr %s138, 8
        %s140 = scalar_lea.vmem [#allocation2], %s139
        %p141 = pneg %p38
        %p142 = pneg %p35
        %p143 = pneg %p59
        %p144 = pneg %p56
        %p145 = pneg %p80
        %p146 = pneg %p77
        %p147 = scmp.eq.s32.totalorder %s17, 0
        // Predicated region
        $region33: #{tpu_custom_call.1} parent=27 // pred_check
          %p148 = pneg %p147
        $region34: #{tpu_custom_call.1} parent=27 // pred_check_branch
          %150 = sbr.rel (%p148) target = $region36
        $region35: #{tpu_custom_call.1} parent=27 // pred_region
          %vm151 = vcmask 517120
          %152 = vst.msk [vmem:[#allocation5] sm:$0x3] %vm151, 0.0
        $region36: #{tpu_custom_call.1} parent=27 // pred_fallthru
          _
        %v153 = vld [vmem:[%s131] sm:$0xff]
        %v154 = vld [vmem:[#allocation5] sm:$0x1]
        %vm155 = vcmask 523264
        %v156 = vsel %vm155, %v153, 0.0
        %v157 = vrot.slane %v156, 4
        %v158 = vadd.f32 %v156, %v157
        %v159 = vrot.slane %v158, 2
        %v160 = vadd.f32 %v158, %v159
        %v161 = vrot.slane %v160, 1
        %v162 = vadd.f32 %v160, %v161
        %v163 = vadd.f32 %v154, %v162
        %vm164 = vcmask 516096
        %165 = vst.msk [vmem:[#allocation5] sm:$0x1] %vm164, %v163
        %v166 = vld [vmem:[#allocation5 + $0x1] sm:$0x1]
        %v167 = vmul.f32 %v153, %v153
        %v168 = vsel %vm155, %v167, 0.0
        %v169 = vrot.slane %v168, 4
        %v170 = vadd.f32 %v168, %v169
        %v171 = vrot.slane %v170, 2
        %v172 = vadd.f32 %v170, %v171
        %v173 = vrot.slane %v172, 1
        %v174 = vadd.f32 %v172, %v173
        %v175 = vadd.f32 %v166, %v174
        %176 = vst.msk [vmem:[#allocation5 + $0x1] sm:$0x1] %vm164, %v175
        %p177 = scmp.eq.s32.totalorder %s17, 1
        // Predicated region
        $region37: #{tpu_custom_call.1} parent=27 // pred_check
          %p178 = pneg %p177
        $region38: #{tpu_custom_call.1} parent=27 // pred_check_branch
          %180 = sbr.rel (%p178) target = $region40
        $region39: #{tpu_custom_call.1} parent=27 // pred_region
          %v181 = vld [vmem:[#allocation5] sm:$0x1]
          %v182 = vmul.f32 %v181, 0.0625
          %v183 = vld [vmem:[#allocation5 + $0x1] sm:$0x1]
          %v184 = vmul.f32 %v183, 0.0625
          %v185 = vmul.f32 %v182, %v182
          %v186 = vsub.f32 %v184, %v185
          %v187 = vld [vmem:[%s1] sm:$0x1]
          %v188 = vadd.f32 %v186, 1e-05
          %v189 = vrsqrt.pop %v188
          %v190 = vmul.f32 %v187, %v189
          %191 = vst.msk [vmem:[#allocation5] sm:$0x1] %vm164, %v190
          %v192 = vld [vmem:[%s1 + $0x1] sm:$0x1]
          %v193 = vmul.f32 %v182, %v190
          %v194 = vsub.f32 %v192, %v193
          %195 = vst.msk [vmem:[#allocation5 + $0x1] sm:$0x1] %vm164, %v194
        $region40: #{tpu_custom_call.1} parent=27 // pred_fallthru
          _
        // Predicated region
        $region41: #{tpu_custom_call.1} parent=27 // pred_check
          %p196 = pneg %p77
        $region42: #{tpu_custom_call.1} parent=27 // pred_check_branch
          %198 = sbr.rel (%p196) target = $region44
        $region43: #{tpu_custom_call.1} parent=27 // pred_region
          %s200 = ssub.s32 32, 32
          %201 = vsyncadd [#allocation4], %s200
          %s203 = sshll.u32 [#allocation5], 4
          %s204 = int_to_ptr.vmem [resolvable:$true] %s203
          %206 = dma.vmem_to_hbm [thread:$0]  %s204, 32, %s2, [#allocation4]
        $region44: #{tpu_custom_call.1} parent=27 // pred_fallthru
          _
        // Predicated region
        $region45: #{tpu_custom_call.1} parent=27 // pred_check
          %p207 = pneg %p77
        $region46: #{tpu_custom_call.1} parent=27 // pred_check_branch
          %209 = sbr.rel (%p207) target = $region48
        $region47: #{tpu_custom_call.1} parent=27 // pred_region
          %210 = dma.done [#allocation4], 32
        $region48: #{tpu_custom_call.1} parent=27 // pred_fallthru
          _
      $region28: #{tpu_custom_call.1} parent=5 // pred_fallthru
        _
      %p211 = scmp.le.s32.totalorder 2, %s12
      // Predicated region
      $region49: #{tpu_custom_call.1} parent=5 // pred_check
        %p212 = pneg %p211
      $region50: #{tpu_custom_call.1} parent=5 // pred_check_branch
        %214 = sbr.rel (%p212) target = $region52
      $region51: #{tpu_custom_call.1} parent=5 // pred_region
        %s215 = ssub.s32 %s12, 2
      $region52: #{tpu_custom_call.1} parent=5 // pred_fallthru
        _
    $region6: #{tpu_custom_call.1} parent=1 // loop_footer
      %s16 = sadd.s32 1, %s12
    $region7: #{tpu_custom_call.1} parent=1 // loop_footer_branch
      %11 = sbr.rel target = $region3
    $region8: #{tpu_custom_call.1} parent=1 // loop_exit
      _
    %216 = vsyncpa [#allocation3], 1
    %s217 = scalar_lea.sflag [#allocation3], 1
    %218 = vsyncpa %s217, 1
    %219 = vsyncpa [#allocation4], 1
    %s220 = scalar_lea.sflag [#allocation4], 1
    %221 = vsyncpa %s220, 1

</llo_original>
